<compile_context>
chip_gen: v7x
topology: tpu7x:2x2x1
jax: 0.10.0
libtpu: 0.0.40
codegen_flags: <defaults>
</compile_context>

<pallas_src>
import functools

import jax
import jax.numpy as jnp
from jax.experimental import pallas as pl
from jax.experimental.pallas import tpu as pltpu


def _round_up(n, m):
    return ((n + m - 1) // m) * m


def _act(h, activation):
    if activation == "relu":
        return jnp.maximum(h, 0.0)
    elif activation == "leaky_relu":
        return jnp.where(h >= 0.0, h, 0.01 * h)  # nn.LeakyReLU default slope
    elif activation == "tanh":
        return jnp.tanh(h)
    raise ValueError(f"unknown activation: {activation}")


def _classifier_kernel(*refs, activation, use_fc2, compute_dtype):
    """Fused MLP forward on one batch tile: fc1 -> act -> [fc2 ->] act -> fc3."""
    if use_fc2:
        x_ref, w1_ref, b1_ref, w2_ref, b2_ref, w3_ref, b3_ref, o_ref = refs
    else:
        x_ref, w1_ref, b1_ref, w3_ref, b3_ref, o_ref = refs

    # In-kernel cast of the streamed x tile: cheap VPU work hidden under the DMA
    # pipeline (replaces the wrapper-side pad/astype pass over the whole batch).
    x = x_ref[...].astype(compute_dtype)

    # fc1: compute-dtype operands on the MXU, f32 accumulation; bias/act in f32.
    h = jnp.dot(x, w1_ref[...], preferred_element_type=jnp.float32)
    h = _act(h + b1_ref[...], activation)

    if use_fc2:
        h = jnp.dot(h.astype(w2_ref.dtype), w2_ref[...],
                    preferred_element_type=jnp.float32) + b2_ref[...]

    # second activation applied in both branches (matches the PyTorch code)
    h = _act(h, activation)

    # fc3 (+ optional extra dropout: identity in eval)
    o = jnp.dot(h.astype(w3_ref.dtype), w3_ref[...],
                preferred_element_type=jnp.float32) + b3_ref[...]
    o_ref[...] = o.astype(o_ref.dtype)


def _vmem_capacity_bytes():
    """Per-generation physical VMEM (v5e/v6e: 128 MiB, v7x: 64 MiB)."""
    try:
        return int(pltpu.get_tpu_info().vmem_capacity_bytes)
    except Exception:
        return 64 * 1024 * 1024  # conservative fallback (v7x per-TensorCore)


def prepare_params(params, *, expnum=2, compute_dtype=jnp.bfloat16):
    """One-time weight preparation (call once, reuse across forward calls).

    Pads the hidden dim to a lane-dense multiple of 128 (zero pads are inert:
    act(0)=0 for relu/leaky_relu/tanh) and casts weights to the MXU compute
    dtype. Biases stay f32 (elementwise math runs in f32; v5e VPU has no bf16).
    Use compute_dtype=jnp.float32 if bit-closeness to the f32 reference matters.
    """
    use_fc2 = expnum not in (1, 3, 4, 10)
    K, H = params["w1"].shape
    C = params["w3"].shape[1]
    Hp = _round_up(H, 128)

    def pad_w(a, rows, cols):
        return jnp.pad(a, ((0, rows - a.shape[0]), (0, cols - a.shape[1]))).astype(compute_dtype)

    def pad_b(a, cols):
        return jnp.pad(a, ((0, 0), (0, cols - a.shape[1]))).astype(jnp.float32)

    prepared = {
        "w1": pad_w(params["w1"], K, Hp), "b1": pad_b(params["b1"], Hp),
        # Output width (num_classes) is intentionally left unpadded: the kernel
        # writes (B, C) directly, avoiding a padded f32 writeback + slice copy.
        "w3": pad_w(params["w3"], Hp, C), "b3": pad_b(params["b3"], C),
    }
    if use_fc2:
        prepared["w2"] = pad_w(params["w2"], Hp, Hp)
        prepared["b2"] = pad_b(params["b2"], Hp)
    return prepared


def classifier_forward(x, prepared, *, activation="relu", block_b=1024, out_dtype=None):
    """Fused Classifier forward as a single batch-tiled Pallas TPU kernel.

    x:        [B, in_size] (any float dtype; streamed untouched, cast in-kernel)
    prepared: dict from prepare_params() (weights stored transposed vs nn.Linear)
    out_dtype: defaults to x.dtype; pass jnp.bfloat16 to halve output HBM traffic
               when downstream allows.
    """
    use_fc2 = "w2" in prepared
    compute_dtype = prepared["w1"].dtype
    B, K = x.shape
    Kw, Hp = prepared["w1"].shape
    assert Kw == K, "in_size mismatch between x and prepared weights"
    C = prepared["w3"].shape[1]
    out_dtype = x.dtype if out_dtype is None else out_dtype

    x_isize = jnp.dtype(x.dtype).itemsize
    w_isize = jnp.dtype(compute_dtype).itemsize
    o_isize = jnp.dtype(out_dtype).itemsize

    cap = _vmem_capacity_bytes()
    budget = int(0.6 * cap)  # ~38 MiB on v7x (64 MiB parts), ~77 MiB on v5e/v6e

    # Weights/biases stay VMEM-resident (constant block index) across all tiles.
    resident_bytes = ((K * Hp + (Hp * Hp if use_fc2 else 0) + Hp * C) * w_isize
                      + (Hp + (Hp if use_fc2 else 0) + C) * 4)
    if resident_bytes > budget // 2:
        # TODO(synk): K-tiling fallback (grid axis over K, f32 accumulator,
        # pl.when(k==0) init) instead of erroring for very large in_size/hidden.
        raise ValueError("resident weights exceed the per-chip VMEM budget; "
                         "K-tiling fallback not implemented")

    def streamed_bytes(tb):
        # double-buffered x-in / out tiles + f32 hidden intermediates
        return 2 * tb * (K * x_isize + C * o_isize) + 2 * tb * Hp * 4

    # Batch tile: multiple of 16 (covers bf16 sublane packing); shrink (staying
    # a multiple of 16) until single-buffered residents + streamed tiles fit.
    if B <= 16:
        TB = B  # full-array block: no ragged edges at all for tiny batches
    else:
        TB = max(16, (min(block_b, B) // 16) * 16)
        while TB > 16 and resident_bytes + streamed_bytes(TB) > budget:
            TB = max(16, _round_up(TB // 2, 16))
    grid = (pl.cdiv(B, TB),)  # ragged last tile handled by masked DMA writeback

    # vmem_limit: generous headroom, but never above ~90% of physical VMEM
    # (the previous 100 MiB cap exceeded v7x's 64 MiB).
    worst = 2 * resident_bytes + streamed_bytes(TB)  # assume dbl-buffered residents
    vmem_limit = int(min(max(1.4 * worst, 32 * 1024 * 1024), 0.9 * cap))

    def build(single_buffer_weights):
        def resident(a):
            kwargs = {}
            if single_buffer_weights:
                # Constant-index blocks are never re-DMA'd; request a single
                # buffer so the resident footprint isn't doubled.
                kwargs["pipeline_mode"] = pl.Buffered(1)
            return pl.BlockSpec(a.shape, lambda i: (0, 0), **kwargs)

        operands = [x, prepared["w1"], prepared["b1"]]
        in_specs = [pl.BlockSpec((TB, K), lambda i: (i, 0)),
                    resident(prepared["w1"]), resident(prepared["b1"])]
        if use_fc2:
            operands += [prepared["w2"], prepared["b2"]]
            in_specs += [resident(prepared["w2"]), resident(prepared["b2"])]
        operands += [prepared["w3"], prepared["b3"]]
        in_specs += [resident(prepared["w3"]), resident(prepared["b3"])]

        kernel = functools.partial(_classifier_kernel, activation=activation,
                                   use_fc2=use_fc2, compute_dtype=compute_dtype)
        call = pl.pallas_call(
            kernel,
            out_shape=jax.ShapeDtypeStruct((B, C), out_dtype),
            grid=grid,
            in_specs=in_specs,
            out_specs=pl.BlockSpec((TB, C), lambda i: (i, 0)),
            compiler_params=pltpu.CompilerParams(
                # batch tiles are independent -> shard across v7x's 2 TensorCores
                dimension_semantics=("parallel",),
                vmem_limit_bytes=vmem_limit),
        )
        return call, operands

    try:
        call, operands = build(single_buffer_weights=True)
        return call(*operands)
    except Exception:
        # Fallback if this JAX build rejects pipeline_mode=pl.Buffered(1).
        call, operands = build(single_buffer_weights=False)
        return call(*operands)


def init_params(key, in_size, hidden_size, num_classes, dtype=jnp.float32):
    """Deterministic nn.Linear-style init (uniform in [-1/sqrt(fan_in), 1/sqrt(fan_in)])."""
    ks = jax.random.split(key, 6)

    def linear(kw, kb, fan_in, fan_out):
        bound = 1.0 / (fan_in ** 0.5)
        w = jax.random.uniform(kw, (fan_in, fan_out), dtype, -bound, bound)
        b = jax.random.uniform(kb, (1, fan_out), dtype, -bound, bound)
        return w, b

    w1, b1 = linear(ks[0], ks[1], in_size, hidden_size)
    w2, b2 = linear(ks[2], ks[3], hidden_size, hidden_size)
    w3, b3 = linear(ks[4], ks[5], hidden_size, num_classes)
    return {"w1": w1, "b1": b1, "w2": w2, "b2": b2, "w3": w3, "b3": b3}


if __name__ == "__main__":
    key = jax.random.PRNGKey(0)
    k_x, k_p = jax.random.split(key)

    B, in_size, hidden_size, num_classes = 2, 16, 32, 8
    x = jax.random.normal(k_x, (B, in_size), dtype=jnp.float32)
    params = init_params(k_p, in_size, hidden_size, num_classes)

    # --- expnum=2: fc2 applied. Weights padded/cast ONCE, reused per call. ---
    prep2 = prepare_params(params, expnum=2, compute_dtype=jnp.bfloat16)
    out = classifier_forward(x, prep2, activation="relu")
    jax.block_until_ready(out)

    h = jnp.maximum(x @ params["w1"] + params["b1"], 0.0)
    h = jnp.maximum(h @ params["w2"] + params["b2"], 0.0)
    ref = h @ params["w3"] + params["b3"]
    assert out.shape == (B, num_classes)
    assert jnp.allclose(out, ref, atol=5e-2, rtol=5e-2), "expnum=2 mismatch"

    # --- expnum=1: fc2 skipped (its weights never prepared nor DMA'd) ---
    prep1 = prepare_params(params, expnum=1, compute_dtype=jnp.bfloat16)
    out1 = classifier_forward(x, prep1, activation="relu")
    jax.block_until_ready(out1)

    h1 = jnp.maximum(x @ params["w1"] + params["b1"], 0.0)
    h1 = jnp.maximum(h1, 0.0)
    ref1 = h1 @ params["w3"] + params["b3"]
    assert out1.shape == (B, num_classes)
    assert jnp.allclose(out1, ref1, atol=5e-2, rtol=5e-2), "expnum=1 mismatch"

    print("KERNEL_OK")
</pallas_src>

<mosaic_0001>
module attributes {stable_mosaic.version = 11 : i64} {
  func.func @_classifier_kernel(%arg0: i32, %arg1: memref<2x16xf32, #tpu.memory_space<vmem>>, %arg2: memref<16x128xbf16, #tpu.memory_space<vmem>>, %arg3: memref<1x128xf32, #tpu.memory_space<vmem>>, %arg4: memref<128x128xbf16, #tpu.memory_space<vmem>>, %arg5: memref<1x128xf32, #tpu.memory_space<vmem>>, %arg6: memref<128x8xbf16, #tpu.memory_space<vmem>>, %arg7: memref<1x8xf32, #tpu.memory_space<vmem>>, %arg8: memref<2x8xf32, #tpu.memory_space<vmem>>) attributes {dimension_semantics = [#tpu.dimension_semantics<parallel>], iteration_bounds = array<i64: 1>, scalar_prefetch = 0 : i64, scratch_operands = 0 : i64, tpu.core_type = #tpu.core_type<tc>, window_params = [{transform_indices = @transform_0, window_bounds = array<i64: 2, 16>}, {pipeline_mode = #tpu.pipeline_mode<synchronous>, transform_indices = @transform_1, window_bounds = array<i64: 16, 128>}, {pipeline_mode = #tpu.pipeline_mode<synchronous>, transform_indices = @transform_2, window_bounds = array<i64: 1, 128>}, {pipeline_mode = #tpu.pipeline_mode<synchronous>, transform_indices = @transform_3, window_bounds = array<i64: 128, 128>}, {pipeline_mode = #tpu.pipeline_mode<synchronous>, transform_indices = @transform_4, window_bounds = array<i64: 1, 128>}, {pipeline_mode = #tpu.pipeline_mode<synchronous>, transform_indices = @transform_5, window_bounds = array<i64: 128, 8>}, {pipeline_mode = #tpu.pipeline_mode<synchronous>, transform_indices = @transform_6, window_bounds = array<i64: 1, 8>}, {transform_indices = @transform_7, window_bounds = array<i64: 2, 8>}]} {
    %c0 = arith.constant 0 : index
    %c0_0 = arith.constant 0 : index
    %0 = vector.load %arg1[%c0, %c0_0] : memref<2x16xf32, #tpu.memory_space<vmem>>, vector<2x16xf32>
    %1 = arith.truncf %0 : vector<2x16xf32> to vector<2x16xbf16>
    %c0_1 = arith.constant 0 : index
    %c0_2 = arith.constant 0 : index
    %2 = vector.load %arg2[%c0_1, %c0_2] : memref<16x128xbf16, #tpu.memory_space<vmem>>, vector<16x128xbf16>
    %cst = arith.constant dense<0.000000e+00> : vector<2x128xf32>
    %3 = tpu.matmul %1, %2, %cst {dimension_numbers = #tpu.dot_dimension_numbers<[1], [0], [0], [1], [0, 0, 1, 1], [], []>} : vector<2x16xbf16>, vector<16x128xbf16>, vector<2x128xf32> -> vector<2x128xf32>
    %c0_3 = arith.constant 0 : index
    %c0_4 = arith.constant 0 : index
    %4 = vector.load %arg3[%c0_3, %c0_4] : memref<1x128xf32, #tpu.memory_space<vmem>>, vector<1x128xf32>
    %5 = vector.broadcast %4 : vector<1x128xf32> to vector<2x128xf32>
    %6 = arith.addf %3, %5 : vector<2x128xf32>
    %cst_5 = arith.constant 0.000000e+00 : f32
    %7 = vector.broadcast %cst_5 : f32 to vector<2x128xf32>
    %8 = arith.maximumf %6, %7 : vector<2x128xf32>
    %9 = arith.truncf %8 : vector<2x128xf32> to vector<2x128xbf16>
    %c0_6 = arith.constant 0 : index
    %c0_7 = arith.constant 0 : index
    %10 = vector.load %arg4[%c0_6, %c0_7] : memref<128x128xbf16, #tpu.memory_space<vmem>>, vector<128x128xbf16>
    %cst_8 = arith.constant dense<0.000000e+00> : vector<2x128xf32>
    %11 = tpu.matmul %9, %10, %cst_8 {dimension_numbers = #tpu.dot_dimension_numbers<[1], [0], [0], [1], [0, 0, 1, 1], [], []>} : vector<2x128xbf16>, vector<128x128xbf16>, vector<2x128xf32> -> vector<2x128xf32>
    %c0_9 = arith.constant 0 : index
    %c0_10 = arith.constant 0 : index
    %12 = vector.load %arg5[%c0_9, %c0_10] : memref<1x128xf32, #tpu.memory_space<vmem>>, vector<1x128xf32>
    %13 = vector.broadcast %12 : vector<1x128xf32> to vector<2x128xf32>
    %14 = arith.addf %11, %13 : vector<2x128xf32>
    %cst_11 = arith.constant 0.000000e+00 : f32
    %15 = vector.broadcast %cst_11 : f32 to vector<2x128xf32>
    %16 = arith.maximumf %14, %15 : vector<2x128xf32>
    %17 = arith.truncf %16 : vector<2x128xf32> to vector<2x128xbf16>
    %c0_12 = arith.constant 0 : index
    %c0_13 = arith.constant 0 : index
    %18 = vector.load %arg6[%c0_12, %c0_13] : memref<128x8xbf16, #tpu.memory_space<vmem>>, vector<128x8xbf16>
    %cst_14 = arith.constant dense<0.000000e+00> : vector<2x8xf32>
    %19 = tpu.matmul %17, %18, %cst_14 {dimension_numbers = #tpu.dot_dimension_numbers<[1], [0], [0], [1], [0, 0, 1, 1], [], []>} : vector<2x128xbf16>, vector<128x8xbf16>, vector<2x8xf32> -> vector<2x8xf32>
    %c0_15 = arith.constant 0 : index
    %c0_16 = arith.constant 0 : index
    %20 = vector.load %arg7[%c0_15, %c0_16] : memref<1x8xf32, #tpu.memory_space<vmem>>, vector<1x8xf32>
    %21 = vector.broadcast %20 : vector<1x8xf32> to vector<2x8xf32>
    %22 = arith.addf %19, %21 : vector<2x8xf32>
    %c0_17 = arith.constant 0 : index
    %c0_18 = arith.constant 0 : index
    %23 = vector.load %arg8[%c0_17, %c0_18] : memref<2x8xf32, #tpu.memory_space<vmem>>, vector<2x8xf32>
    tpu.vector_store %arg8[%c0_17, %c0_18], %22 {strides = array<i32>} : memref<2x8xf32, #tpu.memory_space<vmem>>, vector<2x8xf32>,
    return
  }
  func.func @transform_0(%arg0: i32) -> (i32, i32) {
    %c0_i32 = arith.constant 0 : i32
    %c0_i32_0 = arith.constant 0 : i32
    return %arg0, %c0_i32 : i32, i32
  }
  func.func @transform_1(%arg0: i32) -> (i32, i32) {
    %c0_i32 = arith.constant 0 : i32
    %c0_i32_0 = arith.constant 0 : i32
    %c0_i32_1 = arith.constant 0 : i32
    return %c0_i32, %c0_i32_0 : i32, i32
  }
  func.func @transform_2(%arg0: i32) -> (i32, i32) {
    %c0_i32 = arith.constant 0 : i32
    %c0_i32_0 = arith.constant 0 : i32
    %c0_i32_1 = arith.constant 0 : i32
    return %c0_i32, %c0_i32_0 : i32, i32
  }
  func.func @transform_3(%arg0: i32) -> (i32, i32) {
    %c0_i32 = arith.constant 0 : i32
    %c0_i32_0 = arith.constant 0 : i32
    %c0_i32_1 = arith.constant 0 : i32
    return %c0_i32, %c0_i32_0 : i32, i32
  }
  func.func @transform_4(%arg0: i32) -> (i32, i32) {
    %c0_i32 = arith.constant 0 : i32
    %c0_i32_0 = arith.constant 0 : i32
    %c0_i32_1 = arith.constant 0 : i32
    return %c0_i32, %c0_i32_0 : i32, i32
  }
  func.func @transform_5(%arg0: i32) -> (i32, i32) {
    %c0_i32 = arith.constant 0 : i32
    %c0_i32_0 = arith.constant 0 : i32
    %c0_i32_1 = arith.constant 0 : i32
    return %c0_i32, %c0_i32_0 : i32, i32
  }
  func.func @transform_6(%arg0: i32) -> (i32, i32) {
    %c0_i32 = arith.constant 0 : i32
    %c0_i32_0 = arith.constant 0 : i32
    %c0_i32_1 = arith.constant 0 : i32
    return %c0_i32, %c0_i32_0 : i32, i32
  }
  func.func @transform_7(%arg0: i32) -> (i32, i32) {
    %c0_i32 = arith.constant 0 : i32
    %c0_i32_0 = arith.constant 0 : i32
    return %arg0, %c0_i32 : i32, i32
  }
}

module attributes {stable_mosaic.version = 11 : i64} {
  func.func @_classifier_kernel(%arg0: i32, %arg1: memref<2x16xf32, #tpu.memory_space<vmem>>, %arg2: memref<16x128xbf16, #tpu.memory_space<vmem>>, %arg3: memref<1x128xf32, #tpu.memory_space<vmem>>, %arg4: memref<128x128xbf16, #tpu.memory_space<vmem>>, %arg5: memref<1x128xf32, #tpu.memory_space<vmem>>, %arg6: memref<128x8xbf16, #tpu.memory_space<vmem>>, %arg7: memref<1x8xf32, #tpu.memory_space<vmem>>, %arg8: memref<2x8xf32, #tpu.memory_space<vmem>>) attributes {dimension_semantics = [#tpu.dimension_semantics<parallel>], iteration_bounds = array<i64: 1>, scalar_prefetch = 0 : i64, scratch_operands = 0 : i64, tpu.core_type = #tpu.core_type<tc>, window_params = [{transform_indices = @transform_0, window_bounds = array<i64: 2, 16>}, {pipeline_mode = #tpu.pipeline_mode<synchronous>, transform_indices = @transform_1, window_bounds = array<i64: 16, 128>}, {pipeline_mode = #tpu.pipeline_mode<synchronous>, transform_indices = @transform_2, window_bounds = array<i64: 1, 128>}, {pipeline_mode = #tpu.pipeline_mode<synchronous>, transform_indices = @transform_3, window_bounds = array<i64: 128, 128>}, {pipeline_mode = #tpu.pipeline_mode<synchronous>, transform_indices = @transform_4, window_bounds = array<i64: 1, 128>}, {pipeline_mode = #tpu.pipeline_mode<synchronous>, transform_indices = @transform_5, window_bounds = array<i64: 128, 8>}, {pipeline_mode = #tpu.pipeline_mode<synchronous>, transform_indices = @transform_6, window_bounds = array<i64: 1, 8>}, {transform_indices = @transform_7, window_bounds = array<i64: 2, 8>}]} {
    %c0 = arith.constant 0 : index
    %c0_0 = arith.constant 0 : index
    %0 = vector.load %arg1[%c0, %c0_0] : memref<2x16xf32, #tpu.memory_space<vmem>>, vector<2x16xf32>
    %1 = arith.truncf %0 : vector<2x16xf32> to vector<2x16xbf16>
    %c0_1 = arith.constant 0 : index
    %c0_2 = arith.constant 0 : index
    %2 = vector.load %arg2[%c0_1, %c0_2] : memref<16x128xbf16, #tpu.memory_space<vmem>>, vector<16x128xbf16>
    %cst = arith.constant dense<0.000000e+00> : vector<2x128xf32>
    %3 = tpu.matmul %1, %2, %cst {dimension_numbers = #tpu.dot_dimension_numbers<[1], [0], [0], [1], [0, 0, 1, 1], [], []>} : vector<2x16xbf16>, vector<16x128xbf16>, vector<2x128xf32> -> vector<2x128xf32>
    %c0_3 = arith.constant 0 : index
    %c0_4 = arith.constant 0 : index
    %4 = vector.load %arg3[%c0_3, %c0_4] : memref<1x128xf32, #tpu.memory_space<vmem>>, vector<1x128xf32>
    %5 = vector.broadcast %4 : vector<1x128xf32> to vector<2x128xf32>
    %6 = arith.addf %3, %5 : vector<2x128xf32>
    %cst_5 = arith.constant 0.000000e+00 : f32
    %7 = vector.broadcast %cst_5 : f32 to vector<2x128xf32>
    %8 = arith.maximumf %6, %7 : vector<2x128xf32>
    %9 = arith.truncf %8 : vector<2x128xf32> to vector<2x128xbf16>
    %c0_6 = arith.constant 0 : index
    %c0_7 = arith.constant 0 : index
    %10 = vector.load %arg4[%c0_6, %c0_7] : memref<128x128xbf16, #tpu.memory_space<vmem>>, vector<128x128xbf16>
    %cst_8 = arith.constant dense<0.000000e+00> : vector<2x128xf32>
    %11 = tpu.matmul %9, %10, %cst_8 {dimension_numbers = #tpu.dot_dimension_numbers<[1], [0], [0], [1], [0, 0, 1, 1], [], []>} : vector<2x128xbf16>, vector<128x128xbf16>, vector<2x128xf32> -> vector<2x128xf32>
    %c0_9 = arith.constant 0 : index
    %c0_10 = arith.constant 0 : index
    %12 = vector.load %arg5[%c0_9, %c0_10] : memref<1x128xf32, #tpu.memory_space<vmem>>, vector<1x128xf32>
    %13 = vector.broadcast %12 : vector<1x128xf32> to vector<2x128xf32>
    %14 = arith.addf %11, %13 : vector<2x128xf32>
    %cst_11 = arith.constant 0.000000e+00 : f32
    %15 = vector.broadcast %cst_11 : f32 to vector<2x128xf32>
    %16 = arith.maximumf %14, %15 : vector<2x128xf32>
    %17 = arith.truncf %16 : vector<2x128xf32> to vector<2x128xbf16>
    %c0_12 = arith.constant 0 : index
    %c0_13 = arith.constant 0 : index
    %18 = vector.load %arg6[%c0_12, %c0_13] : memref<128x8xbf16, #tpu.memory_space<vmem>>, vector<128x8xbf16>
    %cst_14 = arith.constant dense<0.000000e+00> : vector<2x8xf32>
    %19 = tpu.matmul %17, %18, %cst_14 {dimension_numbers = #tpu.dot_dimension_numbers<[1], [0], [0], [1], [0, 0, 1, 1], [], []>} : vector<2x128xbf16>, vector<128x8xbf16>, vector<2x8xf32> -> vector<2x8xf32>
    %c0_15 = arith.constant 0 : index
    %c0_16 = arith.constant 0 : index
    %20 = vector.load %arg7[%c0_15, %c0_16] : memref<1x8xf32, #tpu.memory_space<vmem>>, vector<1x8xf32>
    %21 = vector.broadcast %20 : vector<1x8xf32> to vector<2x8xf32>
    %22 = arith.addf %19, %21 : vector<2x8xf32>
    %c0_17 = arith.constant 0 : index
    %c0_18 = arith.constant 0 : index
    %23 = vector.load %arg8[%c0_17, %c0_18] : memref<2x8xf32, #tpu.memory_space<vmem>>, vector<2x8xf32>
    tpu.vector_store %arg8[%c0_17, %c0_18], %22 {strides = array<i32>} : memref<2x8xf32, #tpu.memory_space<vmem>>, vector<2x8xf32>,
    return
  }
  func.func @transform_0(%arg0: i32) -> (i32, i32) {
    %c0_i32 = arith.constant 0 : i32
    %c0_i32_0 = arith.constant 0 : i32
    return %arg0, %c0_i32 : i32, i32
  }
  func.func @transform_1(%arg0: i32) -> (i32, i32) {
    %c0_i32 = arith.constant 0 : i32
    %c0_i32_0 = arith.constant 0 : i32
    %c0_i32_1 = arith.constant 0 : i32
    return %c0_i32, %c0_i32_0 : i32, i32
  }
  func.func @transform_2(%arg0: i32) -> (i32, i32) {
    %c0_i32 = arith.constant 0 : i32
    %c0_i32_0 = arith.constant 0 : i32
    %c0_i32_1 = arith.constant 0 : i32
    return %c0_i32, %c0_i32_0 : i32, i32
  }
  func.func @transform_3(%arg0: i32) -> (i32, i32) {
    %c0_i32 = arith.constant 0 : i32
    %c0_i32_0 = arith.constant 0 : i32
    %c0_i32_1 = arith.constant 0 : i32
    return %c0_i32, %c0_i32_0 : i32, i32
  }
  func.func @transform_4(%arg0: i32) -> (i32, i32) {
    %c0_i32 = arith.constant 0 : i32
    %c0_i32_0 = arith.constant 0 : i32
    %c0_i32_1 = arith.constant 0 : i32
    return %c0_i32, %c0_i32_0 : i32, i32
  }
  func.func @transform_5(%arg0: i32) -> (i32, i32) {
    %c0_i32 = arith.constant 0 : i32
    %c0_i32_0 = arith.constant 0 : i32
    %c0_i32_1 = arith.constant 0 : i32
    return %c0_i32, %c0_i32_0 : i32, i32
  }
  func.func @transform_6(%arg0: i32) -> (i32, i32) {
    %c0_i32 = arith.constant 0 : i32
    %c0_i32_0 = arith.constant 0 : i32
    %c0_i32_1 = arith.constant 0 : i32
    return %c0_i32, %c0_i32_0 : i32, i32
  }
  func.func @transform_7(%arg0: i32) -> (i32, i32) {
    %c0_i32 = arith.constant 0 : i32
    %c0_i32_0 = arith.constant 0 : i32
    return %arg0, %c0_i32 : i32, i32
  }
}

</mosaic_0001>

<llo_original>
// kernel: tpu_custom_call.1
$region0: #{tpu_custom_call.1}
  #allocation0 [shape = 'u32[]', space=smem, size = 0x4, offset = 0x4, fixed_abs, tag = 'smem constant byte address 0x4 - core index']
  #allocation1 [shape = 'u32[144,128]{1,0:T(1,128)}', space=vmem, size = 0x12000, scoped, tag = 'internal scratch']
  %s0 = inlined_call_operand.vmem [shape: f32[2,16], index: 0, kind: input, shape index: {}]
  %s1 = inlined_call_operand.vmem [shape: bf16[16,128], index: 1, kind: input, shape index: {}]
  %s2 = inlined_call_operand.vmem [shape: f32[1,128], index: 2, kind: input, shape index: {}]
  %s3 = inlined_call_operand.vmem [shape: bf16[128,128], index: 3, kind: input, shape index: {}]
  %s4 = inlined_call_operand.vmem [shape: f32[1,128], index: 4, kind: input, shape index: {}]
  %s5 = inlined_call_operand.vmem [shape: bf16[128,8], index: 5, kind: input, shape index: {}]
  %s6 = inlined_call_operand.vmem [shape: f32[1,8], index: 6, kind: input, shape index: {}]
  %s7 = inlined_call_operand.hbm [shape: f32[2,8], index: 7, kind: output, shape index: {}]
  %s8 = sld [smem:[#allocation0]]
  $region38: #{tpu_custom_call.1} parent=0
    _
  %s10 = ssub.s32 1, %s8
  %s11 = scalar_select 0, %s10, %s8
  $region1: #{tpu_custom_call.1} parent=0
    #allocation2 [shape = 'u8[1024]{0}', space=vmem, size = 0x400, scoped, tag = 'output window, operand 0, single buffered']
    #allocation3 [shape = 's32[1]{0}', space=sflag, size = 0x4, scoped, tag = 'scoped memory for tpu_custom_call.1']
    %12 = vsyncpa [#allocation3], 0
    // Predicated region
    $region2: #{tpu_custom_call.1} parent=1 // pred_check
      _
    $region3: #{tpu_custom_call.1} parent=1 // pred_check_branch
      %14 = sbr.rel (0) target = $region5
    $region4: #{tpu_custom_call.1} parent=1 // pred_region
      _
    $region5: #{tpu_custom_call.1} parent=1 // pred_fallthru
      _
    // Predicated region
    $region6: #{tpu_custom_call.1} parent=1 // pred_check
      _
    $region7: #{tpu_custom_call.1} parent=1 // pred_check_branch
      %16 = sbr.rel (0) target = $region9
    $region8: #{tpu_custom_call.1} parent=1 // pred_region
      _
    $region9: #{tpu_custom_call.1} parent=1 // pred_fallthru
      _
    // Predicated region
    $region10: #{tpu_custom_call.1} parent=1 // pred_check
      _
    $region11: #{tpu_custom_call.1} parent=1 // pred_check_branch
      %18 = sbr.rel (0) target = $region13
    $region12: #{tpu_custom_call.1} parent=1 // pred_region
      _
    $region13: #{tpu_custom_call.1} parent=1 // pred_fallthru
      _
    // Predicated region
    $region14: #{tpu_custom_call.1} parent=1 // pred_check
      _
    $region15: #{tpu_custom_call.1} parent=1 // pred_check_branch
      %20 = sbr.rel (0) target = $region17
    $region16: #{tpu_custom_call.1} parent=1 // pred_region
      _
    $region17: #{tpu_custom_call.1} parent=1 // pred_fallthru
      _
    // Predicated region
    $region18: #{tpu_custom_call.1} parent=1 // pred_check
      _
    $region19: #{tpu_custom_call.1} parent=1 // pred_check_branch
      %22 = sbr.rel (0) target = $region21
    $region20: #{tpu_custom_call.1} parent=1 // pred_region
      _
    $region21: #{tpu_custom_call.1} parent=1 // pred_fallthru
      _
    // Predicated region
    $region22: #{tpu_custom_call.1} parent=1 // pred_check
      _
    $region23: #{tpu_custom_call.1} parent=1 // pred_check_branch
      %24 = sbr.rel (0) target = $region25
    $region24: #{tpu_custom_call.1} parent=1 // pred_region
      _
    $region25: #{tpu_custom_call.1} parent=1 // pred_fallthru
      _
    // Predicated region
    $region26: #{tpu_custom_call.1} parent=1 // pred_check
      _
    $region27: #{tpu_custom_call.1} parent=1 // pred_check_branch
      %26 = sbr.rel (0) target = $region29
    $region28: #{tpu_custom_call.1} parent=1 // pred_region
      _
    $region29: #{tpu_custom_call.1} parent=1 // pred_fallthru
      _
    %v28 = vld [vmem:[%s0] sm:$0x3]
    %v29 = vpack.c.bf16 %v28, %v28
    %v30 = vld [vmem:[%s1] sm:$0xf]
    %v31 = vld [vmem:[%s1 + $0x4] sm:$0xf]
    %v32 = vld [vmem:[%s2] sm:$0x1]
    %v34 = vlaneseq
    %v35 = vshrl.u32 %v34, 7
    %v36 = vsub.s32 0, %v35
    %v37 = vrot.slane %v32, %v36
    %v41 = vunpack.c.l.b16 %v30
    %v42 = vunpack.c.l.b16 %v31
    %v43 = vpack.c.b16 %v42, %v41
    %vm45 = vcmask 130048
    %v47 = vsel %vm45, %v29, 0
    %49 = vmatprep.subr.bf16.mxu0 0
    %50 = vmatpush1.bf16.msra.mxu0 %v43
    %51 = vmatprep.subr.bf16.mxu0 0
    %52 = vmatpush1.bf16.msra.mxu0 0
    %53 = vmatprep.subr.bf16.mxu0 0
    %54 = vmatpush1.bf16.msra.mxu0 0
    %55 = vmatprep.subr.bf16.mxu0 0
    %56 = vmatpush1.bf16.msra.mxu0 0
    %57 = vmatprep.subr.bf16.mxu0 0
    %58 = vmatpush1.bf16.msra.mxu0 0
    %59 = vmatprep.subr.bf16.mxu0 0
    %60 = vmatpush1.bf16.msra.mxu0 0
    %61 = vmatprep.subr.bf16.mxu0 0
    %62 = vmatpush1.bf16.msra.mxu0 0
    %63 = vmatprep.subr.bf16.mxu0 0
    %64 = vmatpush1.bf16.msra.mxu0 0
    %65 = vmatprep.subr.bf16.mxu0 0
    %66 = vmatpush1.bf16.msra.mxu0 0
    %67 = vmatprep.subr.bf16.mxu0 0
    %68 = vmatpush1.bf16.msra.mxu0 0
    %69 = vmatprep.subr.bf16.mxu0 0
    %70 = vmatpush1.bf16.msra.mxu0 0
    %71 = vmatprep.subr.bf16.mxu0 0
    %72 = vmatpush1.bf16.msra.mxu0 0
    %73 = vmatprep.subr.bf16.mxu0 0
    %74 = vmatpush1.bf16.msra.mxu0 0
    %75 = vmatprep.subr.bf16.mxu0 0
    %76 = vmatpush1.bf16.msra.mxu0 0
    %77 = vmatprep.subr.bf16.mxu0 0
    %78 = vmatpush1.bf16.msra.mxu0 0
    %79 = vmatprep.subr.bf16.mxu0 0
    %80 = vmatpush1.bf16.msra.mxu0 0
    %81 = vmatprep.mubr.bf16.mxu0 0
    %82 = vmatmul.mubr.bf16.gmra.mrb[0].mxu0 %v47
    %v83 = vpop.f32.mrb[0].mxu0
    %v84 = vadd.f32 %v37, %v83
    %v85 = vpop.f32.mrb[0].mxu0
    %v86 = vpop.f32.mrb[0].mxu0
    %v87 = vpop.f32.mrb[0].mxu0
    %88 = vdwg.mxu0
    %v89 = vmax.f32 %v84, 0.0
    %v90 = vpack.c.bf16 %v89, %v89
    %v91 = vld [vmem:[%s3] sm:$0xf]
    %v92 = vld [vmem:[%s3 + $0x4] sm:$0xf]
    %v93 = vld [vmem:[%s3 + $0x8] sm:$0xf]
    %v94 = vld [vmem:[%s3 + $0xc] sm:$0xf]
    %v95 = vld [vmem:[%s3 + $0x10] sm:$0xf]
    %v96 = vld [vmem:[%s3 + $0x14] sm:$0xf]
    %v97 = vld [vmem:[%s3 + $0x18] sm:$0xf]
    %v98 = vld [vmem:[%s3 + $0x1c] sm:$0xf]
    %v99 = vld [vmem:[%s3 + $0x20] sm:$0xf]
    %v100 = vld [vmem:[%s3 + $0x24] sm:$0xf]
    %v101 = vld [vmem:[%s3 + $0x28] sm:$0xf]
    %v102 = vld [vmem:[%s3 + $0x2c] sm:$0xf]
    %v103 = vld [vmem:[%s3 + $0x30] sm:$0xf]
    %v104 = vld [vmem:[%s3 + $0x34] sm:$0xf]
    %v105 = vld [vmem:[%s3 + $0x38] sm:$0xf]
    %v106 = vld [vmem:[%s3 + $0x3c] sm:$0xf]
    %v107 = vld [vmem:[%s4] sm:$0x1]
    %v109 = vlaneseq
    %v110 = vshrl.u32 %v109, 7
    %v111 = vsub.s32 0, %v110
    %v112 = vrot.slane %v107, %v111
    %v130 = vunpack.c.l.b16 %v91
    %v131 = vunpack.c.l.b16 %v92
    %v132 = vunpack.c.l.b16 %v93
    %v133 = vunpack.c.l.b16 %v94
    %v134 = vunpack.c.l.b16 %v95
    %v135 = vunpack.c.l.b16 %v96
    %v136 = vunpack.c.l.b16 %v97
    %v137 = vunpack.c.l.b16 %v98
    %v138 = vunpack.c.l.b16 %v99
    %v139 = vunpack.c.l.b16 %v100
    %v140 = vunpack.c.l.b16 %v101
    %v141 = vunpack.c.l.b16 %v102
    %v142 = vunpack.c.l.b16 %v103
    %v143 = vunpack.c.l.b16 %v104
    %v144 = vunpack.c.l.b16 %v105
    %v145 = vunpack.c.l.b16 %v106
    %v146 = vpack.c.b16 %v131, %v130
    %v147 = vpack.c.b16 %v133, %v132
    %v148 = vpack.c.b16 %v135, %v134
    %v149 = vpack.c.b16 %v137, %v136
    %v150 = vpack.c.b16 %v139, %v138
    %v151 = vpack.c.b16 %v141, %v140
    %v152 = vpack.c.b16 %v143, %v142
    %v153 = vpack.c.b16 %v145, %v144
    %162 = vmatprep.subr.bf16.mxu0 0
    %163 = vmatpush1.bf16.msra.mxu0 %v146
    %164 = vmatprep.subr.bf16.mxu0 0
    %165 = vmatpush1.bf16.msra.mxu0 %v147
    %166 = vmatprep.subr.bf16.mxu0 0
    %167 = vmatpush1.bf16.msra.mxu0 %v148
    %168 = vmatprep.subr.bf16.mxu0 0
    %169 = vmatpush1.bf16.msra.mxu0 %v149
    %170 = vmatprep.subr.bf16.mxu0 0
    %171 = vmatpush1.bf16.msra.mxu0 %v150
    %172 = vmatprep.subr.bf16.mxu0 0
    %173 = vmatpush1.bf16.msra.mxu0 %v151
    %174 = vmatprep.subr.bf16.mxu0 0
    %175 = vmatpush1.bf16.msra.mxu0 %v152
    %176 = vmatprep.subr.bf16.mxu0 0
    %177 = vmatpush1.bf16.msra.mxu0 %v153
    %178 = vmatprep.subr.bf16.mxu0 0
    %179 = vmatpush1.bf16.msra.mxu0 0
    %180 = vmatprep.subr.bf16.mxu0 0
    %181 = vmatpush1.bf16.msra.mxu0 0
    %182 = vmatprep.subr.bf16.mxu0 0
    %183 = vmatpush1.bf16.msra.mxu0 0
    %184 = vmatprep.subr.bf16.mxu0 0
    %185 = vmatpush1.bf16.msra.mxu0 0
    %186 = vmatprep.subr.bf16.mxu0 0
    %187 = vmatpush1.bf16.msra.mxu0 0
    %188 = vmatprep.subr.bf16.mxu0 0
    %189 = vmatpush1.bf16.msra.mxu0 0
    %190 = vmatprep.subr.bf16.mxu0 0
    %191 = vmatpush1.bf16.msra.mxu0 0
    %192 = vmatprep.subr.bf16.mxu0 0
    %193 = vmatpush1.bf16.msra.mxu0 0
    %194 = vmatprep.mubr.bf16.mxu0 0
    %195 = vmatmul.mubr.bf16.gmra.mrb[0].mxu0 %v90
    %v196 = vpop.f32.mrb[0].mxu0
    %v197 = vadd.f32 %v112, %v196
    %v198 = vpop.f32.mrb[0].mxu0
    %v199 = vpop.f32.mrb[0].mxu0
    %v200 = vpop.f32.mrb[0].mxu0
    %201 = vdwg.mxu0
    %v202 = vmax.f32 %v197, 0.0
    %v203 = vpack.c.bf16 %v202, %v202
    %v204 = vld [vmem:[%s5] sm:$0xf]
    %v205 = vld [vmem:[%s5 + $0x4] sm:$0xf]
    %v206 = vld [vmem:[%s5 + $0x8] sm:$0xf]
    %v207 = vld [vmem:[%s5 + $0xc] sm:$0xf]
    %v208 = vld [vmem:[%s5 + $0x10] sm:$0xf]
    %v209 = vld [vmem:[%s5 + $0x14] sm:$0xf]
    %v210 = vld [vmem:[%s5 + $0x18] sm:$0xf]
    %v211 = vld [vmem:[%s5 + $0x1c] sm:$0xf]
    %v212 = vld [vmem:[%s5 + $0x20] sm:$0xf]
    %v213 = vld [vmem:[%s5 + $0x24] sm:$0xf]
    %v214 = vld [vmem:[%s5 + $0x28] sm:$0xf]
    %v215 = vld [vmem:[%s5 + $0x2c] sm:$0xf]
    %v216 = vld [vmem:[%s5 + $0x30] sm:$0xf]
    %v217 = vld [vmem:[%s5 + $0x34] sm:$0xf]
    %v218 = vld [vmem:[%s5 + $0x38] sm:$0xf]
    %v219 = vld [vmem:[%s5 + $0x3c] sm:$0xf]
    %v220 = vld [vmem:[%s6] sm:$0x1]
    %v222 = vlaneseq
    %v223 = vshrl.u32 %v222, 7
    %v224 = vsub.s32 0, %v223
    %v225 = vrot.slane %v220, %v224
    %v243 = vunpack.c.l.b16 %v204
    %v244 = vunpack.c.l.b16 %v205
    %v245 = vunpack.c.l.b16 %v206
    %v246 = vunpack.c.l.b16 %v207
    %v247 = vunpack.c.l.b16 %v208
    %v248 = vunpack.c.l.b16 %v209
    %v249 = vunpack.c.l.b16 %v210
    %v250 = vunpack.c.l.b16 %v211
    %v251 = vunpack.c.l.b16 %v212
    %v252 = vunpack.c.l.b16 %v213
    %v253 = vunpack.c.l.b16 %v214
    %v254 = vunpack.c.l.b16 %v215
    %v255 = vunpack.c.l.b16 %v216
    %v256 = vunpack.c.l.b16 %v217
    %v257 = vunpack.c.l.b16 %v218
    %v258 = vunpack.c.l.b16 %v219
    %v259 = vpack.c.b16 %v244, %v243
    %v260 = vpack.c.b16 %v246, %v245
    %v261 = vpack.c.b16 %v248, %v247
    %v262 = vpack.c.b16 %v250, %v249
    %v263 = vpack.c.b16 %v252, %v251
    %v264 = vpack.c.b16 %v254, %v253
    %v265 = vpack.c.b16 %v256, %v255
    %v266 = vpack.c.b16 %v258, %v257
    %275 = vmatprep.subr.bf16.mxu0 0
    %276 = vmatpush1.bf16.msra.mxu0 %v259
    %277 = vmatprep.subr.bf16.mxu0 0
    %278 = vmatpush1.bf16.msra.mxu0 %v260
    %279 = vmatprep.subr.bf16.mxu0 0
    %280 = vmatpush1.bf16.msra.mxu0 %v261
    %281 = vmatprep.subr.bf16.mxu0 0
    %282 = vmatpush1.bf16.msra.mxu0 %v262
    %283 = vmatprep.subr.bf16.mxu0 0
    %284 = vmatpush1.bf16.msra.mxu0 %v263
    %285 = vmatprep.subr.bf16.mxu0 0
    %286 = vmatpush1.bf16.msra.mxu0 %v264
    %287 = vmatprep.subr.bf16.mxu0 0
    %288 = vmatpush1.bf16.msra.mxu0 %v265
    %289 = vmatprep.subr.bf16.mxu0 0
    %290 = vmatpush1.bf16.msra.mxu0 %v266
    %291 = vmatprep.subr.bf16.mxu0 0
    %292 = vmatpush1.bf16.msra.mxu0 0
    %293 = vmatprep.subr.bf16.mxu0 0
    %294 = vmatpush1.bf16.msra.mxu0 0
    %295 = vmatprep.subr.bf16.mxu0 0
    %296 = vmatpush1.bf16.msra.mxu0 0
    %297 = vmatprep.subr.bf16.mxu0 0
    %298 = vmatpush1.bf16.msra.mxu0 0
    %299 = vmatprep.subr.bf16.mxu0 0
    %300 = vmatpush1.bf16.msra.mxu0 0
    %301 = vmatprep.subr.bf16.mxu0 0
    %302 = vmatpush1.bf16.msra.mxu0 0
    %303 = vmatprep.subr.bf16.mxu0 0
    %304 = vmatpush1.bf16.msra.mxu0 0
    %305 = vmatprep.subr.bf16.mxu0 0
    %306 = vmatpush1.bf16.msra.mxu0 0
    %307 = vmatprep.mubr.bf16.mxu0 0
    %308 = vmatmul.mubr.bf16.gmra.mrb[0].mxu0 %v203
    %v309 = vpop.f32.mrb[0].mxu0
    %v310 = vadd.f32 %v225, %v309
    %v311 = vpop.f32.mrb[0].mxu0
    %v312 = vpop.f32.mrb[0].mxu0
    %v313 = vpop.f32.mrb[0].mxu0
    %314 = vdwg.mxu0
    %vm315 = vcmask 58368
    %316 = vst.msk [vmem:[#allocation2] sm:$0x3] %vm315, %v310
    // Predicated region
    $region30: #{tpu_custom_call.1} parent=1 // pred_check
      _
    $region31: #{tpu_custom_call.1} parent=1 // pred_check_branch
      %318 = sbr.rel (0) target = $region33
    $region32: #{tpu_custom_call.1} parent=1 // pred_region
      %s320 = ssub.s32 32, 32
      %321 = vsyncadd [#allocation3], %s320
      %s323 = sshll.u32 [#allocation2], 4
      %s324 = int_to_ptr.vmem [resolvable:$true] %s323
      %326 = dma.vmem_to_hbm [thread:$0]  %s324, 32, %s7, [#allocation3]
    $region33: #{tpu_custom_call.1} parent=1 // pred_fallthru
      _
    // Predicated region
    $region34: #{tpu_custom_call.1} parent=1 // pred_check
      _
    $region35: #{tpu_custom_call.1} parent=1 // pred_check_branch
      %328 = sbr.rel (0) target = $region37
    $region36: #{tpu_custom_call.1} parent=1 // pred_region
      %329 = dma.done [#allocation3], 32
    $region37: #{tpu_custom_call.1} parent=1 // pred_fallthru
      _
    %330 = vsyncpa [#allocation3], 1

// kernel: tpu_custom_call.1
$region0: #{tpu_custom_call.1}
  #allocation0 [shape = 'u32[]', space=smem, size = 0x4, offset = 0x4, fixed_abs, tag = 'smem constant byte address 0x4 - core index']
  #allocation1 [shape = 'u32[144,128]{1,0:T(1,128)}', space=vmem, size = 0x12000, scoped, tag = 'internal scratch']
  %s0 = inlined_call_operand.vmem [shape: f32[2,16], index: 0, kind: input, shape index: {}]
  %s1 = inlined_call_operand.vmem [shape: bf16[16,128], index: 1, kind: input, shape index: {}]
  %s2 = inlined_call_operand.vmem [shape: f32[1,128], index: 2, kind: input, shape index: {}]
  %s3 = inlined_call_operand.vmem [shape: bf16[128,128], index: 3, kind: input, shape index: {}]
  %s4 = inlined_call_operand.vmem [shape: f32[1,128], index: 4, kind: input, shape index: {}]
  %s5 = inlined_call_operand.vmem [shape: bf16[128,8], index: 5, kind: input, shape index: {}]
  %s6 = inlined_call_operand.vmem [shape: f32[1,8], index: 6, kind: input, shape index: {}]
  %s7 = inlined_call_operand.hbm [shape: f32[2,8], index: 7, kind: output, shape index: {}]
  %s8 = sld [smem:[#allocation0]]
  $region38: #{tpu_custom_call.1} parent=0
    _
  %s10 = ssub.s32 1, %s8
  %s11 = scalar_select 0, %s10, %s8
  $region1: #{tpu_custom_call.1} parent=0
    #allocation2 [shape = 'u8[1024]{0}', space=vmem, size = 0x400, scoped, tag = 'output window, operand 0, single buffered']
    #allocation3 [shape = 's32[1]{0}', space=sflag, size = 0x4, scoped, tag = 'scoped memory for tpu_custom_call.1']
    %12 = vsyncpa [#allocation3], 0
    // Predicated region
    $region2: #{tpu_custom_call.1} parent=1 // pred_check
      _
    $region3: #{tpu_custom_call.1} parent=1 // pred_check_branch
      %14 = sbr.rel (0) target = $region5
    $region4: #{tpu_custom_call.1} parent=1 // pred_region
      _
    $region5: #{tpu_custom_call.1} parent=1 // pred_fallthru
      _
    // Predicated region
    $region6: #{tpu_custom_call.1} parent=1 // pred_check
      _
    $region7: #{tpu_custom_call.1} parent=1 // pred_check_branch
      %16 = sbr.rel (0) target = $region9
    $region8: #{tpu_custom_call.1} parent=1 // pred_region
      _
    $region9: #{tpu_custom_call.1} parent=1 // pred_fallthru
      _
    // Predicated region
    $region10: #{tpu_custom_call.1} parent=1 // pred_check
      _
    $region11: #{tpu_custom_call.1} parent=1 // pred_check_branch
      %18 = sbr.rel (0) target = $region13
    $region12: #{tpu_custom_call.1} parent=1 // pred_region
      _
    $region13: #{tpu_custom_call.1} parent=1 // pred_fallthru
      _
    // Predicated region
    $region14: #{tpu_custom_call.1} parent=1 // pred_check
      _
    $region15: #{tpu_custom_call.1} parent=1 // pred_check_branch
      %20 = sbr.rel (0) target = $region17
    $region16: #{tpu_custom_call.1} parent=1 // pred_region
      _
    $region17: #{tpu_custom_call.1} parent=1 // pred_fallthru
      _
    // Predicated region
    $region18: #{tpu_custom_call.1} parent=1 // pred_check
      _
    $region19: #{tpu_custom_call.1} parent=1 // pred_check_branch
      %22 = sbr.rel (0) target = $region21
    $region20: #{tpu_custom_call.1} parent=1 // pred_region
      _
    $region21: #{tpu_custom_call.1} parent=1 // pred_fallthru
      _
    // Predicated region
    $region22: #{tpu_custom_call.1} parent=1 // pred_check
      _
    $region23: #{tpu_custom_call.1} parent=1 // pred_check_branch
      %24 = sbr.rel (0) target = $region25
    $region24: #{tpu_custom_call.1} parent=1 // pred_region
      _
    $region25: #{tpu_custom_call.1} parent=1 // pred_fallthru
      _
    // Predicated region
    $region26: #{tpu_custom_call.1} parent=1 // pred_check
      _
    $region27: #{tpu_custom_call.1} parent=1 // pred_check_branch
      %26 = sbr.rel (0) target = $region29
    $region28: #{tpu_custom_call.1} parent=1 // pred_region
      _
    $region29: #{tpu_custom_call.1} parent=1 // pred_fallthru
      _
    %v28 = vld [vmem:[%s0] sm:$0x3]
    %v29 = vpack.c.bf16 %v28, %v28
    %v30 = vld [vmem:[%s1] sm:$0xf]
    %v31 = vld [vmem:[%s1 + $0x4] sm:$0xf]
    %v32 = vld [vmem:[%s2] sm:$0x1]
    %v34 = vlaneseq
    %v35 = vshrl.u32 %v34, 7
    %v36 = vsub.s32 0, %v35
    %v37 = vrot.slane %v32, %v36
    %v41 = vunpack.c.l.b16 %v30
    %v42 = vunpack.c.l.b16 %v31
    %v43 = vpack.c.b16 %v42, %v41
    %vm45 = vcmask 130048
    %v47 = vsel %vm45, %v29, 0
    %49 = vmatprep.subr.bf16.mxu0 0
    %50 = vmatpush1.bf16.msra.mxu0 %v43
    %51 = vmatprep.subr.bf16.mxu0 0
    %52 = vmatpush1.bf16.msra.mxu0 0
    %53 = vmatprep.subr.bf16.mxu0 0
    %54 = vmatpush1.bf16.msra.mxu0 0
    %55 = vmatprep.subr.bf16.mxu0 0
    %56 = vmatpush1.bf16.msra.mxu0 0
    %57 = vmatprep.subr.bf16.mxu0 0
    %58 = vmatpush1.bf16.msra.mxu0 0
    %59 = vmatprep.subr.bf16.mxu0 0
    %60 = vmatpush1.bf16.msra.mxu0 0
    %61 = vmatprep.subr.bf16.mxu0 0
    %62 = vmatpush1.bf16.msra.mxu0 0
    %63 = vmatprep.subr.bf16.mxu0 0
    %64 = vmatpush1.bf16.msra.mxu0 0
    %65 = vmatprep.subr.bf16.mxu0 0
    %66 = vmatpush1.bf16.msra.mxu0 0
    %67 = vmatprep.subr.bf16.mxu0 0
    %68 = vmatpush1.bf16.msra.mxu0 0
    %69 = vmatprep.subr.bf16.mxu0 0
    %70 = vmatpush1.bf16.msra.mxu0 0
    %71 = vmatprep.subr.bf16.mxu0 0
    %72 = vmatpush1.bf16.msra.mxu0 0
    %73 = vmatprep.subr.bf16.mxu0 0
    %74 = vmatpush1.bf16.msra.mxu0 0
    %75 = vmatprep.subr.bf16.mxu0 0
    %76 = vmatpush1.bf16.msra.mxu0 0
    %77 = vmatprep.subr.bf16.mxu0 0
    %78 = vmatpush1.bf16.msra.mxu0 0
    %79 = vmatprep.subr.bf16.mxu0 0
    %80 = vmatpush1.bf16.msra.mxu0 0
    %81 = vmatprep.mubr.bf16.mxu0 0
    %82 = vmatmul.mubr.bf16.gmra.mrb[0].mxu0 %v47
    %v83 = vpop.f32.mrb[0].mxu0
    %v84 = vadd.f32 %v37, %v83
    %v85 = vpop.f32.mrb[0].mxu0
    %v86 = vpop.f32.mrb[0].mxu0
    %v87 = vpop.f32.mrb[0].mxu0
    %88 = vdwg.mxu0
    %v89 = vmax.f32 %v84, 0.0
    %v90 = vpack.c.bf16 %v89, %v89
    %v91 = vld [vmem:[%s3] sm:$0xf]
    %v92 = vld [vmem:[%s3 + $0x4] sm:$0xf]
    %v93 = vld [vmem:[%s3 + $0x8] sm:$0xf]
    %v94 = vld [vmem:[%s3 + $0xc] sm:$0xf]
    %v95 = vld [vmem:[%s3 + $0x10] sm:$0xf]
    %v96 = vld [vmem:[%s3 + $0x14] sm:$0xf]
    %v97 = vld [vmem:[%s3 + $0x18] sm:$0xf]
    %v98 = vld [vmem:[%s3 + $0x1c] sm:$0xf]
    %v99 = vld [vmem:[%s3 + $0x20] sm:$0xf]
    %v100 = vld [vmem:[%s3 + $0x24] sm:$0xf]
    %v101 = vld [vmem:[%s3 + $0x28] sm:$0xf]
    %v102 = vld [vmem:[%s3 + $0x2c] sm:$0xf]
    %v103 = vld [vmem:[%s3 + $0x30] sm:$0xf]
    %v104 = vld [vmem:[%s3 + $0x34] sm:$0xf]
    %v105 = vld [vmem:[%s3 + $0x38] sm:$0xf]
    %v106 = vld [vmem:[%s3 + $0x3c] sm:$0xf]
    %v107 = vld [vmem:[%s4] sm:$0x1]
    %v109 = vlaneseq
    %v110 = vshrl.u32 %v109, 7
    %v111 = vsub.s32 0, %v110
    %v112 = vrot.slane %v107, %v111
    %v130 = vunpack.c.l.b16 %v91
    %v131 = vunpack.c.l.b16 %v92
    %v132 = vunpack.c.l.b16 %v93
    %v133 = vunpack.c.l.b16 %v94
    %v134 = vunpack.c.l.b16 %v95
    %v135 = vunpack.c.l.b16 %v96
    %v136 = vunpack.c.l.b16 %v97
    %v137 = vunpack.c.l.b16 %v98
    %v138 = vunpack.c.l.b16 %v99
    %v139 = vunpack.c.l.b16 %v100
    %v140 = vunpack.c.l.b16 %v101
    %v141 = vunpack.c.l.b16 %v102
    %v142 = vunpack.c.l.b16 %v103
    %v143 = vunpack.c.l.b16 %v104
    %v144 = vunpack.c.l.b16 %v105
    %v145 = vunpack.c.l.b16 %v106
    %v146 = vpack.c.b16 %v131, %v130
    %v147 = vpack.c.b16 %v133, %v132
    %v148 = vpack.c.b16 %v135, %v134
    %v149 = vpack.c.b16 %v137, %v136
    %v150 = vpack.c.b16 %v139, %v138
    %v151 = vpack.c.b16 %v141, %v140
    %v152 = vpack.c.b16 %v143, %v142
    %v153 = vpack.c.b16 %v145, %v144
    %162 = vmatprep.subr.bf16.mxu0 0
    %163 = vmatpush1.bf16.msra.mxu0 %v146
    %164 = vmatprep.subr.bf16.mxu0 0
    %165 = vmatpush1.bf16.msra.mxu0 %v147
    %166 = vmatprep.subr.bf16.mxu0 0
    %167 = vmatpush1.bf16.msra.mxu0 %v148
    %168 = vmatprep.subr.bf16.mxu0 0
    %169 = vmatpush1.bf16.msra.mxu0 %v149
    %170 = vmatprep.subr.bf16.mxu0 0
    %171 = vmatpush1.bf16.msra.mxu0 %v150
    %172 = vmatprep.subr.bf16.mxu0 0
    %173 = vmatpush1.bf16.msra.mxu0 %v151
    %174 = vmatprep.subr.bf16.mxu0 0
    %175 = vmatpush1.bf16.msra.mxu0 %v152
    %176 = vmatprep.subr.bf16.mxu0 0
    %177 = vmatpush1.bf16.msra.mxu0 %v153
    %178 = vmatprep.subr.bf16.mxu0 0
    %179 = vmatpush1.bf16.msra.mxu0 0
    %180 = vmatprep.subr.bf16.mxu0 0
    %181 = vmatpush1.bf16.msra.mxu0 0
    %182 = vmatprep.subr.bf16.mxu0 0
    %183 = vmatpush1.bf16.msra.mxu0 0
    %184 = vmatprep.subr.bf16.mxu0 0
    %185 = vmatpush1.bf16.msra.mxu0 0
    %186 = vmatprep.subr.bf16.mxu0 0
    %187 = vmatpush1.bf16.msra.mxu0 0
    %188 = vmatprep.subr.bf16.mxu0 0
    %189 = vmatpush1.bf16.msra.mxu0 0
    %190 = vmatprep.subr.bf16.mxu0 0
    %191 = vmatpush1.bf16.msra.mxu0 0
    %192 = vmatprep.subr.bf16.mxu0 0
    %193 = vmatpush1.bf16.msra.mxu0 0
    %194 = vmatprep.mubr.bf16.mxu0 0
    %195 = vmatmul.mubr.bf16.gmra.mrb[0].mxu0 %v90
    %v196 = vpop.f32.mrb[0].mxu0
    %v197 = vadd.f32 %v112, %v196
    %v198 = vpop.f32.mrb[0].mxu0
    %v199 = vpop.f32.mrb[0].mxu0
    %v200 = vpop.f32.mrb[0].mxu0
    %201 = vdwg.mxu0
    %v202 = vmax.f32 %v197, 0.0
    %v203 = vpack.c.bf16 %v202, %v202
    %v204 = vld [vmem:[%s5] sm:$0xf]
    %v205 = vld [vmem:[%s5 + $0x4] sm:$0xf]
    %v206 = vld [vmem:[%s5 + $0x8] sm:$0xf]
    %v207 = vld [vmem:[%s5 + $0xc] sm:$0xf]
    %v208 = vld [vmem:[%s5 + $0x10] sm:$0xf]
    %v209 = vld [vmem:[%s5 + $0x14] sm:$0xf]
    %v210 = vld [vmem:[%s5 + $0x18] sm:$0xf]
    %v211 = vld [vmem:[%s5 + $0x1c] sm:$0xf]
    %v212 = vld [vmem:[%s5 + $0x20] sm:$0xf]
    %v213 = vld [vmem:[%s5 + $0x24] sm:$0xf]
    %v214 = vld [vmem:[%s5 + $0x28] sm:$0xf]
    %v215 = vld [vmem:[%s5 + $0x2c] sm:$0xf]
    %v216 = vld [vmem:[%s5 + $0x30] sm:$0xf]
    %v217 = vld [vmem:[%s5 + $0x34] sm:$0xf]
    %v218 = vld [vmem:[%s5 + $0x38] sm:$0xf]
    %v219 = vld [vmem:[%s5 + $0x3c] sm:$0xf]
    %v220 = vld [vmem:[%s6] sm:$0x1]
    %v222 = vlaneseq
    %v223 = vshrl.u32 %v222, 7
    %v224 = vsub.s32 0, %v223
    %v225 = vrot.slane %v220, %v224
    %v243 = vunpack.c.l.b16 %v204
    %v244 = vunpack.c.l.b16 %v205
    %v245 = vunpack.c.l.b16 %v206
    %v246 = vunpack.c.l.b16 %v207
    %v247 = vunpack.c.l.b16 %v208
    %v248 = vunpack.c.l.b16 %v209
    %v249 = vunpack.c.l.b16 %v210
    %v250 = vunpack.c.l.b16 %v211
    %v251 = vunpack.c.l.b16 %v212
    %v252 = vunpack.c.l.b16 %v213
    %v253 = vunpack.c.l.b16 %v214
    %v254 = vunpack.c.l.b16 %v215
    %v255 = vunpack.c.l.b16 %v216
    %v256 = vunpack.c.l.b16 %v217
    %v257 = vunpack.c.l.b16 %v218
    %v258 = vunpack.c.l.b16 %v219
    %v259 = vpack.c.b16 %v244, %v243
    %v260 = vpack.c.b16 %v246, %v245
    %v261 = vpack.c.b16 %v248, %v247
    %v262 = vpack.c.b16 %v250, %v249
    %v263 = vpack.c.b16 %v252, %v251
    %v264 = vpack.c.b16 %v254, %v253
    %v265 = vpack.c.b16 %v256, %v255
    %v266 = vpack.c.b16 %v258, %v257
    %275 = vmatprep.subr.bf16.mxu0 0
    %276 = vmatpush1.bf16.msra.mxu0 %v259
    %277 = vmatprep.subr.bf16.mxu0 0
    %278 = vmatpush1.bf16.msra.mxu0 %v260
    %279 = vmatprep.subr.bf16.mxu0 0
    %280 = vmatpush1.bf16.msra.mxu0 %v261
    %281 = vmatprep.subr.bf16.mxu0 0
    %282 = vmatpush1.bf16.msra.mxu0 %v262
    %283 = vmatprep.subr.bf16.mxu0 0
    %284 = vmatpush1.bf16.msra.mxu0 %v263
    %285 = vmatprep.subr.bf16.mxu0 0
    %286 = vmatpush1.bf16.msra.mxu0 %v264
    %287 = vmatprep.subr.bf16.mxu0 0
    %288 = vmatpush1.bf16.msra.mxu0 %v265
    %289 = vmatprep.subr.bf16.mxu0 0
    %290 = vmatpush1.bf16.msra.mxu0 %v266
    %291 = vmatprep.subr.bf16.mxu0 0
    %292 = vmatpush1.bf16.msra.mxu0 0
    %293 = vmatprep.subr.bf16.mxu0 0
    %294 = vmatpush1.bf16.msra.mxu0 0
    %295 = vmatprep.subr.bf16.mxu0 0
    %296 = vmatpush1.bf16.msra.mxu0 0
    %297 = vmatprep.subr.bf16.mxu0 0
    %298 = vmatpush1.bf16.msra.mxu0 0
    %299 = vmatprep.subr.bf16.mxu0 0
    %300 = vmatpush1.bf16.msra.mxu0 0
    %301 = vmatprep.subr.bf16.mxu0 0
    %302 = vmatpush1.bf16.msra.mxu0 0
    %303 = vmatprep.subr.bf16.mxu0 0
    %304 = vmatpush1.bf16.msra.mxu0 0
    %305 = vmatprep.subr.bf16.mxu0 0
    %306 = vmatpush1.bf16.msra.mxu0 0
    %307 = vmatprep.mubr.bf16.mxu0 0
    %308 = vmatmul.mubr.bf16.gmra.mrb[0].mxu0 %v203
    %v309 = vpop.f32.mrb[0].mxu0
    %v310 = vadd.f32 %v225, %v309
    %v311 = vpop.f32.mrb[0].mxu0
    %v312 = vpop.f32.mrb[0].mxu0
    %v313 = vpop.f32.mrb[0].mxu0
    %314 = vdwg.mxu0
    %vm315 = vcmask 58368
    %316 = vst.msk [vmem:[#allocation2] sm:$0x3] %vm315, %v310
    // Predicated region
    $region30: #{tpu_custom_call.1} parent=1 // pred_check
      _
    $region31: #{tpu_custom_call.1} parent=1 // pred_check_branch
      %318 = sbr.rel (0) target = $region33
    $region32: #{tpu_custom_call.1} parent=1 // pred_region
      %s320 = ssub.s32 32, 32
      %321 = vsyncadd [#allocation3], %s320
      %s323 = sshll.u32 [#allocation2], 4
      %s324 = int_to_ptr.vmem [resolvable:$true] %s323
      %326 = dma.vmem_to_hbm [thread:$0]  %s324, 32, %s7, [#allocation3]
    $region33: #{tpu_custom_call.1} parent=1 // pred_fallthru
      _
    // Predicated region
    $region34: #{tpu_custom_call.1} parent=1 // pred_check
      _
    $region35: #{tpu_custom_call.1} parent=1 // pred_check_branch
      %328 = sbr.rel (0) target = $region37
    $region36: #{tpu_custom_call.1} parent=1 // pred_region
      %329 = dma.done [#allocation3], 32
    $region37: #{tpu_custom_call.1} parent=1 // pred_fallthru
      _
    %330 = vsyncpa [#allocation3], 1

</llo_original>
